<compile_context>
chip_gen: v6e
topology: v6e:2x2x1
jax: 0.10.0
libtpu: 0.0.40
codegen_flags: <defaults>
</compile_context>

<pallas_src>
import jax
import jax.numpy as jnp
import numpy as np
from jax.experimental import pallas as pl
from jax.experimental.pallas import tpu as pltpu

EMBED_SIZE = 8
KERNEL_SIZES = (3, 4, 5)
NUM_CHANNELS = (32, 32, 32)
STATIC_IN = 16
STATIC_OUT = 8
NUM_CLASSES = 3
ENC_DIM = sum(NUM_CHANNELS)            # 96
CLS_IN = ENC_DIM + STATIC_OUT          # 104

BATCH = 2
SEQ_LEN = 16


# --------------------------------------------------------------------------
# Fused Pallas kernel
# --------------------------------------------------------------------------
def _cnn_tag_kernel(x_ref, static_ref, wconv_ref, bconv_ref, wsfc_ref, wg_ref,
                    out_ref):
    """Fused CNNTag forward.

    x_ref     : (B, L, 8)   inputs, time-major / channels-last
    static_ref: (B, 16)
    wconv_ref : (96, 32)    conv weights, row-packed: conv_i tap j input c at
                            row off_i + j*8 + c  (off = 0, 24, 56)
    bconv_ref : (3, 32)     conv biases (row i = conv_i)
    wsfc_ref  : (17, 8)     static_fc weight (rows 0:16) + bias (row 16)
    wg_ref    : (105, 3)    classifier_g weight (rows 0:104) + bias (row 104)
    out_ref   : (B, 3)      glob logits — the only HBM store of the kernel
    """
    B, L, Cin = x_ref.shape

    # ---- static_fc: Linear(16, 8) -----------------------------------------
    s = (jnp.dot(static_ref[...], wsfc_ref[:STATIC_IN, :],
                 preferred_element_type=jnp.float32)
         + wsfc_ref[STATIC_IN:STATIC_IN + 1, :])                     # (B, 8)

    # ---- classifier_g accumulator: bias + static contribution -------------
    # (concat with the pooled features is folded into split matmuls below)
    glob = (jnp.dot(s, wg_ref[ENC_DIM:ENC_DIM + STATIC_OUT, :],
                    preferred_element_type=jnp.float32)
            + wg_ref[CLS_IN:CLS_IN + 1, :])                          # (B, 3)

    bconv = bconv_ref[...]                                           # (3, 32)

    row_off = 0   # row offset into packed conv weights
    col_off = 0   # row offset into classifier weight (encoding position)
    for i, (k, cout) in enumerate(zip(KERNEL_SIZES, NUM_CHANNELS)):
        Lout = L - k + 1

        # im2col slab with batch folded into the sublane (M) dimension:
        #   slab[b*Lout + t, j*Cin + c] = x[b, t + j, c]
        rows = []
        for b in range(B):
            xb = x_ref[b]                                            # (L, Cin)
            rows.append(jnp.concatenate(
                [xb[j:j + Lout, :] for j in range(k)], axis=-1))     # (Lout, k*Cin)
        slab = jnp.concatenate(rows, axis=0)                         # (B*Lout, k*Cin)

        # one MXU matmul per conv branch
        w = wconv_ref[row_off:row_off + k * Cin, :]                  # (k*Cin, 32)
        h = jnp.dot(slab, w, preferred_element_type=jnp.float32)
        h = jnp.maximum(h + bconv[i:i + 1, :], 0.0)                  # (B*Lout, 32)

        # GlobalMaxPool1d over the time axis, per batch element
        pooled = jnp.concatenate(
            [jnp.max(h[b * Lout:(b + 1) * Lout, :], axis=0, keepdims=True)
             for b in range(B)], axis=0)                             # (B, 32)

        # classifier_g contribution of this branch
        glob = glob + jnp.dot(pooled, wg_ref[col_off:col_off + cout, :],
                              preferred_element_type=jnp.float32)

        row_off += k * Cin
        col_off += cout

    # TODO(synk): nn.Dropout(0.5) is identity in eval mode; training-time
    #             random masking is not implemented.
    # classifier_l (and the unused self.classifiers Linear(5,5)) produce
    # values the PyTorch forward discards; they are omitted.
    out_ref[...] = glob


# --------------------------------------------------------------------------
# Wrapper
# --------------------------------------------------------------------------
def cnn_tag_forward(x, static, params):
    """x: (B, L, embed_size) — same tensor the PyTorch forward receives
    (it permutes internally).  static: (B, 16).  Returns glob: (B, 3)."""
    B = x.shape[0]
    vmem = pl.BlockSpec(memory_space=pltpu.MemorySpace.VMEM)
    return pl.pallas_call(
        _cnn_tag_kernel,
        out_shape=jax.ShapeDtypeStruct((B, NUM_CLASSES), jnp.float32),
        in_specs=[vmem] * 6,
        out_specs=vmem,
    )(x, static, params["w_conv"], params["b_conv"],
      params["w_sfc_packed"], params["w_g_packed"])


# --------------------------------------------------------------------------
# Deterministic synthetic parameters (packed layouts used by the kernel)
# --------------------------------------------------------------------------
def init_params(key):
    n_keys = 2 * len(KERNEL_SIZES) + 4
    ks = list(jax.random.split(key, n_keys))
    idx = 0

    def nrm(shape, scale=0.1):
        nonlocal idx
        v = scale * jax.random.normal(ks[idx], shape, jnp.float32)
        idx += 1
        return v

    # conv weights packed along rows: (sum_k k*Cin, Cout) = (96, 32)
    w_conv = jnp.concatenate(
        [nrm((k * EMBED_SIZE, c)) for k, c in zip(KERNEL_SIZES, NUM_CHANNELS)],
        axis=0)
    b_conv = jnp.concatenate([nrm((1, c)) for c in NUM_CHANNELS], axis=0)  # (3, 32)

    w_sfc = nrm((STATIC_IN, STATIC_OUT))          # Linear(16, 8)
    b_sfc = nrm((1, STATIC_OUT))
    w_g = nrm((CLS_IN, NUM_CLASSES))              # Linear(104, 3)
    b_g = nrm((1, NUM_CLASSES))

    return dict(
        w_conv=w_conv,
        b_conv=b_conv,
        w_sfc_packed=jnp.concatenate([w_sfc, b_sfc], axis=0),   # (17, 8)
        w_g_packed=jnp.concatenate([w_g, b_g], axis=0),         # (105, 3)
    )


# --------------------------------------------------------------------------
# Pure-JAX reference (for correctness check)
# --------------------------------------------------------------------------
def reference_forward(x, static, params):
    B, L, Cin = x.shape
    wsfc = params["w_sfc_packed"]
    s = static @ wsfc[:STATIC_IN] + wsfc[STATIC_IN:STATIC_IN + 1]    # static_fc

    pooled_all = []
    row_off = 0
    for i, (k, c) in enumerate(zip(KERNEL_SIZES, NUM_CHANNELS)):
        Lout = L - k + 1
        w = params["w_conv"][row_off:row_off + k * Cin]              # (k*Cin, c)
        b = params["b_conv"][i]
        h = sum(jnp.einsum("blc,co->blo", x[:, j:j + Lout, :],
                           w[j * Cin:(j + 1) * Cin]) for j in range(k)) + b
        h = jax.nn.relu(h)
        pooled_all.append(jnp.max(h, axis=1))                        # global max pool
        row_off += k * Cin

    enc = jnp.concatenate(pooled_all + [s], axis=1)                  # (B, 104)
    wg = params["w_g_packed"]
    return enc @ wg[:CLS_IN] + wg[CLS_IN:CLS_IN + 1]


# --------------------------------------------------------------------------
if __name__ == "__main__":
    key = jax.random.PRNGKey(0)
    kx, ks, kp = jax.random.split(key, 3)
    x = jax.random.normal(kx, (BATCH, SEQ_LEN, EMBED_SIZE), jnp.float32)
    static = jax.random.normal(ks, (BATCH, STATIC_IN), jnp.float32)
    params = init_params(kp)

    glob = jax.block_until_ready(cnn_tag_forward(x, static, params))
    assert glob.shape == (BATCH, NUM_CLASSES)

    ref = reference_forward(x, static, params)
    np.testing.assert_allclose(np.asarray(glob), np.asarray(ref),
                               rtol=1e-4, atol=1e-4)
    print("KERNEL_OK")
</pallas_src>

<mosaic_0001>
module attributes {stable_mosaic.version = 11 : i64} {
  func.func @_cnn_tag_kernel(%arg0: memref<2x16x8xf32, #tpu.memory_space<vmem>>, %arg1: memref<2x16xf32, #tpu.memory_space<vmem>>, %arg2: memref<96x32xf32, #tpu.memory_space<vmem>>, %arg3: memref<3x32xf32, #tpu.memory_space<vmem>>, %arg4: memref<17x8xf32, #tpu.memory_space<vmem>>, %arg5: memref<105x3xf32, #tpu.memory_space<vmem>>, %arg6: memref<2x3xf32, #tpu.memory_space<vmem>>) attributes {dimension_semantics = [], scalar_prefetch = 0 : i64, scratch_operands = 0 : i64, tpu.core_type = #tpu.core_type<tc>} {
    %c0 = arith.constant 0 : index
    %c0_0 = arith.constant 0 : index
    %0 = vector.load %arg1[%c0, %c0_0] : memref<2x16xf32, #tpu.memory_space<vmem>>, vector<2x16xf32>
    %c0_1 = arith.constant 0 : index
    %c0_2 = arith.constant 0 : index
    %1 = vector.load %arg4[%c0_1, %c0_2] : memref<17x8xf32, #tpu.memory_space<vmem>>, vector<16x8xf32>
    %cst = arith.constant dense<0.000000e+00> : vector<2x8xf32>
    %2 = tpu.matmul %0, %1, %cst {dimension_numbers = #tpu.dot_dimension_numbers<[1], [0], [0], [1], [0, 0, 1, 1], [], []>} : vector<2x16xf32>, vector<16x8xf32>, vector<2x8xf32> -> vector<2x8xf32>
    %c16 = arith.constant 16 : index
    %c0_3 = arith.constant 0 : index
    %3 = vector.load %arg4[%c16, %c0_3] : memref<17x8xf32, #tpu.memory_space<vmem>>, vector<1x8xf32>
    %4 = vector.broadcast %3 : vector<1x8xf32> to vector<2x8xf32>
    %5 = arith.addf %2, %4 : vector<2x8xf32>
    %c96 = arith.constant 96 : index
    %c0_4 = arith.constant 0 : index
    %6 = vector.load %arg5[%c96, %c0_4] : memref<105x3xf32, #tpu.memory_space<vmem>>, vector<8x3xf32>
    %cst_5 = arith.constant dense<0.000000e+00> : vector<2x3xf32>
    %7 = tpu.matmul %5, %6, %cst_5 {dimension_numbers = #tpu.dot_dimension_numbers<[1], [0], [0], [1], [0, 0, 1, 1], [], []>} : vector<2x8xf32>, vector<8x3xf32>, vector<2x3xf32> -> vector<2x3xf32>
    %c104 = arith.constant 104 : index
    %c0_6 = arith.constant 0 : index
    %8 = vector.load %arg5[%c104, %c0_6] : memref<105x3xf32, #tpu.memory_space<vmem>>, vector<1x3xf32>
    %9 = vector.broadcast %8 : vector<1x3xf32> to vector<2x3xf32>
    %10 = arith.addf %7, %9 : vector<2x3xf32>
    %c0_7 = arith.constant 0 : index
    %c0_8 = arith.constant 0 : index
    %11 = vector.load %arg3[%c0_7, %c0_8] : memref<3x32xf32, #tpu.memory_space<vmem>>, vector<3x32xf32>
    %c0_9 = arith.constant 0 : index
    %c0_10 = arith.constant 0 : index
    %c0_11 = arith.constant 0 : index
    %12 = vector.load %arg0[%c0_9, %c0_10, %c0_11] : memref<2x16x8xf32, #tpu.memory_space<vmem>>, vector<1x16x8xf32>
    %13 = vector.shape_cast %12 : vector<1x16x8xf32> to vector<16x8xf32>
    %14 = vector.extract_strided_slice %13 {offsets = [0, 0], sizes = [14, 8], strides = [1, 1]} : vector<16x8xf32> to vector<14x8xf32>
    %15 = vector.extract_strided_slice %13 {offsets = [1, 0], sizes = [14, 8], strides = [1, 1]} : vector<16x8xf32> to vector<14x8xf32>
    %16 = vector.extract_strided_slice %13 {offsets = [2, 0], sizes = [14, 8], strides = [1, 1]} : vector<16x8xf32> to vector<14x8xf32>
    %17 = tpu.concatenate %14, %15, %16 in 1 : vector<14x8xf32>, vector<14x8xf32>, vector<14x8xf32> -> vector<14x24xf32>
    %c1 = arith.constant 1 : index
    %c0_12 = arith.constant 0 : index
    %c0_13 = arith.constant 0 : index
    %18 = vector.load %arg0[%c1, %c0_12, %c0_13] : memref<2x16x8xf32, #tpu.memory_space<vmem>>, vector<1x16x8xf32>
    %19 = vector.shape_cast %18 : vector<1x16x8xf32> to vector<16x8xf32>
    %20 = vector.extract_strided_slice %19 {offsets = [0, 0], sizes = [14, 8], strides = [1, 1]} : vector<16x8xf32> to vector<14x8xf32>
    %21 = vector.extract_strided_slice %19 {offsets = [1, 0], sizes = [14, 8], strides = [1, 1]} : vector<16x8xf32> to vector<14x8xf32>
    %22 = vector.extract_strided_slice %19 {offsets = [2, 0], sizes = [14, 8], strides = [1, 1]} : vector<16x8xf32> to vector<14x8xf32>
    %23 = tpu.concatenate %20, %21, %22 in 1 : vector<14x8xf32>, vector<14x8xf32>, vector<14x8xf32> -> vector<14x24xf32>
    %24 = tpu.concatenate %17, %23 in 0 : vector<14x24xf32>, vector<14x24xf32> -> vector<28x24xf32>
    %c0_14 = arith.constant 0 : index
    %c0_15 = arith.constant 0 : index
    %25 = vector.load %arg2[%c0_14, %c0_15] : memref<96x32xf32, #tpu.memory_space<vmem>>, vector<24x32xf32>
    %cst_16 = arith.constant dense<0.000000e+00> : vector<28x32xf32>
    %26 = tpu.matmul %24, %25, %cst_16 {dimension_numbers = #tpu.dot_dimension_numbers<[1], [0], [0], [1], [0, 0, 1, 1], [], []>} : vector<28x24xf32>, vector<24x32xf32>, vector<28x32xf32> -> vector<28x32xf32>
    %27 = vector.extract_strided_slice %11 {offsets = [0, 0], sizes = [1, 32], strides = [1, 1]} : vector<3x32xf32> to vector<1x32xf32>
    %28 = vector.broadcast %27 : vector<1x32xf32> to vector<28x32xf32>
    %29 = arith.addf %26, %28 : vector<28x32xf32>
    %cst_17 = arith.constant 0.000000e+00 : f32
    %30 = vector.broadcast %cst_17 : f32 to vector<28x32xf32>
    %31 = arith.maximumf %29, %30 : vector<28x32xf32>
    %32 = vector.extract_strided_slice %31 {offsets = [0, 0], sizes = [14, 32], strides = [1, 1]} : vector<28x32xf32> to vector<14x32xf32>
    %cst_18 = arith.constant dense<0xFF800000> : vector<32xf32>
    %33 = vector.multi_reduction <maximumf>, %32, %cst_18 [0] : vector<14x32xf32> to vector<32xf32>
    %34 = vector.shape_cast %33 : vector<32xf32> to vector<1x32xf32>
    %35 = vector.extract_strided_slice %31 {offsets = [14, 0], sizes = [14, 32], strides = [1, 1]} : vector<28x32xf32> to vector<14x32xf32>
    %cst_19 = arith.constant dense<0xFF800000> : vector<32xf32>
    %36 = vector.multi_reduction <maximumf>, %35, %cst_19 [0] : vector<14x32xf32> to vector<32xf32>
    %37 = vector.shape_cast %36 : vector<32xf32> to vector<1x32xf32>
    %38 = tpu.concatenate %34, %37 in 0 : vector<1x32xf32>, vector<1x32xf32> -> vector<2x32xf32>
    %c0_20 = arith.constant 0 : index
    %c0_21 = arith.constant 0 : index
    %39 = vector.load %arg5[%c0_20, %c0_21] : memref<105x3xf32, #tpu.memory_space<vmem>>, vector<32x3xf32>
    %cst_22 = arith.constant dense<0.000000e+00> : vector<2x3xf32>
    %40 = tpu.matmul %38, %39, %cst_22 {dimension_numbers = #tpu.dot_dimension_numbers<[1], [0], [0], [1], [0, 0, 1, 1], [], []>} : vector<2x32xf32>, vector<32x3xf32>, vector<2x3xf32> -> vector<2x3xf32>
    %41 = arith.addf %10, %40 : vector<2x3xf32>
    %c0_23 = arith.constant 0 : index
    %c0_24 = arith.constant 0 : index
    %c0_25 = arith.constant 0 : index
    %42 = vector.load %arg0[%c0_23, %c0_24, %c0_25] : memref<2x16x8xf32, #tpu.memory_space<vmem>>, vector<1x16x8xf32>
    %43 = vector.shape_cast %42 : vector<1x16x8xf32> to vector<16x8xf32>
    %44 = vector.extract_strided_slice %43 {offsets = [0, 0], sizes = [13, 8], strides = [1, 1]} : vector<16x8xf32> to vector<13x8xf32>
    %45 = vector.extract_strided_slice %43 {offsets = [1, 0], sizes = [13, 8], strides = [1, 1]} : vector<16x8xf32> to vector<13x8xf32>
    %46 = vector.extract_strided_slice %43 {offsets = [2, 0], sizes = [13, 8], strides = [1, 1]} : vector<16x8xf32> to vector<13x8xf32>
    %47 = vector.extract_strided_slice %43 {offsets = [3, 0], sizes = [13, 8], strides = [1, 1]} : vector<16x8xf32> to vector<13x8xf32>
    %48 = tpu.concatenate %44, %45, %46, %47 in 1 : vector<13x8xf32>, vector<13x8xf32>, vector<13x8xf32>, vector<13x8xf32> -> vector<13x32xf32>
    %c1_26 = arith.constant 1 : index
    %c0_27 = arith.constant 0 : index
    %c0_28 = arith.constant 0 : index
    %49 = vector.load %arg0[%c1_26, %c0_27, %c0_28] : memref<2x16x8xf32, #tpu.memory_space<vmem>>, vector<1x16x8xf32>
    %50 = vector.shape_cast %49 : vector<1x16x8xf32> to vector<16x8xf32>
    %51 = vector.extract_strided_slice %50 {offsets = [0, 0], sizes = [13, 8], strides = [1, 1]} : vector<16x8xf32> to vector<13x8xf32>
    %52 = vector.extract_strided_slice %50 {offsets = [1, 0], sizes = [13, 8], strides = [1, 1]} : vector<16x8xf32> to vector<13x8xf32>
    %53 = vector.extract_strided_slice %50 {offsets = [2, 0], sizes = [13, 8], strides = [1, 1]} : vector<16x8xf32> to vector<13x8xf32>
    %54 = vector.extract_strided_slice %50 {offsets = [3, 0], sizes = [13, 8], strides = [1, 1]} : vector<16x8xf32> to vector<13x8xf32>
    %55 = tpu.concatenate %51, %52, %53, %54 in 1 : vector<13x8xf32>, vector<13x8xf32>, vector<13x8xf32>, vector<13x8xf32> -> vector<13x32xf32>
    %56 = tpu.concatenate %48, %55 in 0 : vector<13x32xf32>, vector<13x32xf32> -> vector<26x32xf32>
    %c24 = arith.constant 24 : index
    %c0_29 = arith.constant 0 : index
    %57 = vector.load %arg2[%c24, %c0_29] : memref<96x32xf32, #tpu.memory_space<vmem>>, vector<32x32xf32>
    %cst_30 = arith.constant dense<0.000000e+00> : vector<26x32xf32>
    %58 = tpu.matmul %56, %57, %cst_30 {dimension_numbers = #tpu.dot_dimension_numbers<[1], [0], [0], [1], [0, 0, 1, 1], [], []>} : vector<26x32xf32>, vector<32x32xf32>, vector<26x32xf32> -> vector<26x32xf32>
    %59 = vector.extract_strided_slice %11 {offsets = [1, 0], sizes = [1, 32], strides = [1, 1]} : vector<3x32xf32> to vector<1x32xf32>
    %60 = vector.broadcast %59 : vector<1x32xf32> to vector<26x32xf32>
    %61 = arith.addf %58, %60 : vector<26x32xf32>
    %cst_31 = arith.constant 0.000000e+00 : f32
    %62 = vector.broadcast %cst_31 : f32 to vector<26x32xf32>
    %63 = arith.maximumf %61, %62 : vector<26x32xf32>
    %64 = vector.extract_strided_slice %63 {offsets = [0, 0], sizes = [13, 32], strides = [1, 1]} : vector<26x32xf32> to vector<13x32xf32>
    %cst_32 = arith.constant dense<0xFF800000> : vector<32xf32>
    %65 = vector.multi_reduction <maximumf>, %64, %cst_32 [0] : vector<13x32xf32> to vector<32xf32>
    %66 = vector.shape_cast %65 : vector<32xf32> to vector<1x32xf32>
    %67 = vector.extract_strided_slice %63 {offsets = [13, 0], sizes = [13, 32], strides = [1, 1]} : vector<26x32xf32> to vector<13x32xf32>
    %cst_33 = arith.constant dense<0xFF800000> : vector<32xf32>
    %68 = vector.multi_reduction <maximumf>, %67, %cst_33 [0] : vector<13x32xf32> to vector<32xf32>
    %69 = vector.shape_cast %68 : vector<32xf32> to vector<1x32xf32>
    %70 = tpu.concatenate %66, %69 in 0 : vector<1x32xf32>, vector<1x32xf32> -> vector<2x32xf32>
    %c32 = arith.constant 32 : index
    %c0_34 = arith.constant 0 : index
    %71 = vector.load %arg5[%c32, %c0_34] : memref<105x3xf32, #tpu.memory_space<vmem>>, vector<32x3xf32>
    %cst_35 = arith.constant dense<0.000000e+00> : vector<2x3xf32>
    %72 = tpu.matmul %70, %71, %cst_35 {dimension_numbers = #tpu.dot_dimension_numbers<[1], [0], [0], [1], [0, 0, 1, 1], [], []>} : vector<2x32xf32>, vector<32x3xf32>, vector<2x3xf32> -> vector<2x3xf32>
    %73 = arith.addf %41, %72 : vector<2x3xf32>
    %c0_36 = arith.constant 0 : index
    %c0_37 = arith.constant 0 : index
    %c0_38 = arith.constant 0 : index
    %74 = vector.load %arg0[%c0_36, %c0_37, %c0_38] : memref<2x16x8xf32, #tpu.memory_space<vmem>>, vector<1x16x8xf32>
    %75 = vector.shape_cast %74 : vector<1x16x8xf32> to vector<16x8xf32>
    %76 = vector.extract_strided_slice %75 {offsets = [0, 0], sizes = [12, 8], strides = [1, 1]} : vector<16x8xf32> to vector<12x8xf32>
    %77 = vector.extract_strided_slice %75 {offsets = [1, 0], sizes = [12, 8], strides = [1, 1]} : vector<16x8xf32> to vector<12x8xf32>
    %78 = vector.extract_strided_slice %75 {offsets = [2, 0], sizes = [12, 8], strides = [1, 1]} : vector<16x8xf32> to vector<12x8xf32>
    %79 = vector.extract_strided_slice %75 {offsets = [3, 0], sizes = [12, 8], strides = [1, 1]} : vector<16x8xf32> to vector<12x8xf32>
    %80 = vector.extract_strided_slice %75 {offsets = [4, 0], sizes = [12, 8], strides = [1, 1]} : vector<16x8xf32> to vector<12x8xf32>
    %81 = tpu.concatenate %76, %77, %78, %79, %80 in 1 : vector<12x8xf32>, vector<12x8xf32>, vector<12x8xf32>, vector<12x8xf32>, vector<12x8xf32> -> vector<12x40xf32>
    %c1_39 = arith.constant 1 : index
    %c0_40 = arith.constant 0 : index
    %c0_41 = arith.constant 0 : index
    %82 = vector.load %arg0[%c1_39, %c0_40, %c0_41] : memref<2x16x8xf32, #tpu.memory_space<vmem>>, vector<1x16x8xf32>
    %83 = vector.shape_cast %82 : vector<1x16x8xf32> to vector<16x8xf32>
    %84 = vector.extract_strided_slice %83 {offsets = [0, 0], sizes = [12, 8], strides = [1, 1]} : vector<16x8xf32> to vector<12x8xf32>
    %85 = vector.extract_strided_slice %83 {offsets = [1, 0], sizes = [12, 8], strides = [1, 1]} : vector<16x8xf32> to vector<12x8xf32>
    %86 = vector.extract_strided_slice %83 {offsets = [2, 0], sizes = [12, 8], strides = [1, 1]} : vector<16x8xf32> to vector<12x8xf32>
    %87 = vector.extract_strided_slice %83 {offsets = [3, 0], sizes = [12, 8], strides = [1, 1]} : vector<16x8xf32> to vector<12x8xf32>
    %88 = vector.extract_strided_slice %83 {offsets = [4, 0], sizes = [12, 8], strides = [1, 1]} : vector<16x8xf32> to vector<12x8xf32>
    %89 = tpu.concatenate %84, %85, %86, %87, %88 in 1 : vector<12x8xf32>, vector<12x8xf32>, vector<12x8xf32>, vector<12x8xf32>, vector<12x8xf32> -> vector<12x40xf32>
    %90 = tpu.concatenate %81, %89 in 0 : vector<12x40xf32>, vector<12x40xf32> -> vector<24x40xf32>
    %c56 = arith.constant 56 : index
    %c0_42 = arith.constant 0 : index
    %91 = vector.load %arg2[%c56, %c0_42] : memref<96x32xf32, #tpu.memory_space<vmem>>, vector<40x32xf32>
    %cst_43 = arith.constant dense<0.000000e+00> : vector<24x32xf32>
    %92 = tpu.matmul %90, %91, %cst_43 {dimension_numbers = #tpu.dot_dimension_numbers<[1], [0], [0], [1], [0, 0, 1, 1], [], []>} : vector<24x40xf32>, vector<40x32xf32>, vector<24x32xf32> -> vector<24x32xf32>
    %93 = vector.extract_strided_slice %11 {offsets = [2, 0], sizes = [1, 32], strides = [1, 1]} : vector<3x32xf32> to vector<1x32xf32>
    %94 = vector.broadcast %93 : vector<1x32xf32> to vector<24x32xf32>
    %95 = arith.addf %92, %94 : vector<24x32xf32>
    %cst_44 = arith.constant 0.000000e+00 : f32
    %96 = vector.broadcast %cst_44 : f32 to vector<24x32xf32>
    %97 = arith.maximumf %95, %96 : vector<24x32xf32>
    %98 = vector.extract_strided_slice %97 {offsets = [0, 0], sizes = [12, 32], strides = [1, 1]} : vector<24x32xf32> to vector<12x32xf32>
    %cst_45 = arith.constant dense<0xFF800000> : vector<32xf32>
    %99 = vector.multi_reduction <maximumf>, %98, %cst_45 [0] : vector<12x32xf32> to vector<32xf32>
    %100 = vector.shape_cast %99 : vector<32xf32> to vector<1x32xf32>
    %101 = vector.extract_strided_slice %97 {offsets = [12, 0], sizes = [12, 32], strides = [1, 1]} : vector<24x32xf32> to vector<12x32xf32>
    %cst_46 = arith.constant dense<0xFF800000> : vector<32xf32>
    %102 = vector.multi_reduction <maximumf>, %101, %cst_46 [0] : vector<12x32xf32> to vector<32xf32>
    %103 = vector.shape_cast %102 : vector<32xf32> to vector<1x32xf32>
    %104 = tpu.concatenate %100, %103 in 0 : vector<1x32xf32>, vector<1x32xf32> -> vector<2x32xf32>
    %c64 = arith.constant 64 : index
    %c0_47 = arith.constant 0 : index
    %105 = vector.load %arg5[%c64, %c0_47] : memref<105x3xf32, #tpu.memory_space<vmem>>, vector<32x3xf32>
    %cst_48 = arith.constant dense<0.000000e+00> : vector<2x3xf32>
    %106 = tpu.matmul %104, %105, %cst_48 {dimension_numbers = #tpu.dot_dimension_numbers<[1], [0], [0], [1], [0, 0, 1, 1], [], []>} : vector<2x32xf32>, vector<32x3xf32>, vector<2x3xf32> -> vector<2x3xf32>
    %107 = arith.addf %73, %106 : vector<2x3xf32>
    %c0_49 = arith.constant 0 : index
    %c0_50 = arith.constant 0 : index
    %108 = vector.load %arg6[%c0_49, %c0_50] : memref<2x3xf32, #tpu.memory_space<vmem>>, vector<2x3xf32>
    tpu.vector_store %arg6[%c0_49, %c0_50], %107 {strides = array<i32>} : memref<2x3xf32, #tpu.memory_space<vmem>>, vector<2x3xf32>,
    return
  }
}

</mosaic_0001>

<llo_original>
// kernel: tpu_custom_call.1
$region0: #{tpu_custom_call.1}
  #allocation0 [shape = 'u32[]', space=smem, size = 0x4, offset = 0x4, fixed_abs, tag = 'smem constant byte address 0x4 - core index']
  #allocation1 [shape = 'u32[144,128]{1,0:T(1,128)}', space=vmem, size = 0x12000, scoped, tag = 'internal scratch']
  %s0 = inlined_call_operand.vmem [shape: f32[2,16,8], index: 0, kind: input, shape index: {}]
  %s1 = inlined_call_operand.vmem [shape: f32[2,16], index: 1, kind: input, shape index: {}]
  %s2 = inlined_call_operand.vmem [shape: f32[96,32], index: 2, kind: input, shape index: {}]
  %s3 = inlined_call_operand.vmem [shape: f32[3,32], index: 3, kind: input, shape index: {}]
  %s4 = inlined_call_operand.vmem [shape: f32[17,8], index: 4, kind: input, shape index: {}]
  %s5 = inlined_call_operand.vmem [shape: f32[105,3], index: 5, kind: input, shape index: {}]
  %s6 = inlined_call_operand.hbm [shape: f32[2,3], index: 6, kind: output, shape index: {}]
  %s7 = sld [smem:[#allocation0]]
  $region34: #{tpu_custom_call.1} parent=0
    _
  %s9 = ssub.s32 1, %s7
  %s10 = scalar_select 0, %s9, %s7
  $region1: #{tpu_custom_call.1} parent=0
    #allocation2 [shape = 'u8[1024]{0}', space=vmem, size = 0x400, scoped, tag = 'output window, operand 0, single buffered']
    #allocation3 [shape = 's32[1]{0}', space=sflag, size = 0x4, scoped, tag = 'scoped memory for tpu_custom_call.1']
    %11 = vsyncpa [#allocation3], 0
    // Predicated region
    $region2: #{tpu_custom_call.1} parent=1 // pred_check
      _
    $region3: #{tpu_custom_call.1} parent=1 // pred_check_branch
      %13 = sbr.rel (0) target = $region5
    $region4: #{tpu_custom_call.1} parent=1 // pred_region
      _
    $region5: #{tpu_custom_call.1} parent=1 // pred_fallthru
      _
    // Predicated region
    $region6: #{tpu_custom_call.1} parent=1 // pred_check
      _
    $region7: #{tpu_custom_call.1} parent=1 // pred_check_branch
      %15 = sbr.rel (0) target = $region9
    $region8: #{tpu_custom_call.1} parent=1 // pred_region
      _
    $region9: #{tpu_custom_call.1} parent=1 // pred_fallthru
      _
    // Predicated region
    $region10: #{tpu_custom_call.1} parent=1 // pred_check
      _
    $region11: #{tpu_custom_call.1} parent=1 // pred_check_branch
      %17 = sbr.rel (0) target = $region13
    $region12: #{tpu_custom_call.1} parent=1 // pred_region
      _
    $region13: #{tpu_custom_call.1} parent=1 // pred_fallthru
      _
    // Predicated region
    $region14: #{tpu_custom_call.1} parent=1 // pred_check
      _
    $region15: #{tpu_custom_call.1} parent=1 // pred_check_branch
      %19 = sbr.rel (0) target = $region17
    $region16: #{tpu_custom_call.1} parent=1 // pred_region
      _
    $region17: #{tpu_custom_call.1} parent=1 // pred_fallthru
      _
    // Predicated region
    $region18: #{tpu_custom_call.1} parent=1 // pred_check
      _
    $region19: #{tpu_custom_call.1} parent=1 // pred_check_branch
      %21 = sbr.rel (0) target = $region21
    $region20: #{tpu_custom_call.1} parent=1 // pred_region
      _
    $region21: #{tpu_custom_call.1} parent=1 // pred_fallthru
      _
    // Predicated region
    $region22: #{tpu_custom_call.1} parent=1 // pred_check
      _
    $region23: #{tpu_custom_call.1} parent=1 // pred_check_branch
      %23 = sbr.rel (0) target = $region25
    $region24: #{tpu_custom_call.1} parent=1 // pred_region
      _
    $region25: #{tpu_custom_call.1} parent=1 // pred_fallthru
      _
    %v24 = vld [vmem:[%s1] sm:$0x3]
    %v25 = vld [vmem:[%s4] sm:$0xff]
    %v26 = vld [vmem:[%s4 + $0x8] sm:$0xff]
    %v27 = vld [vmem:[%s4 + $0x10] sm:$0x1]
    %v28 = vlaneseq
    %v29 = vshrl.u32 %v28, 7
    %v30 = vsub.s32 0, %v29
    %v31 = vrot.slane %v27, %v30
    %vm32 = vcmask 130048
    %v34 = vsel %vm32, %v24, 0
    %36 = vmatprep.subr.mxu0 0.0
    %37 = vmatpush1.msra.mxu0 0.0
    %38 = vmatprep.subr.mxu0 0.0
    %39 = vmatpush1.msra.mxu0 0.0
    %40 = vmatprep.subr.mxu0 0.0
    %41 = vmatpush1.msra.mxu0 0.0
    %42 = vmatprep.subr.mxu0 0.0
    %43 = vmatpush1.msra.mxu0 0.0
    %44 = vmatprep.subr.mxu0 0.0
    %45 = vmatpush1.msra.mxu0 0.0
    %46 = vmatprep.subr.mxu0 0.0
    %47 = vmatpush1.msra.mxu0 0.0
    %48 = vmatprep.subr.mxu0 0.0
    %49 = vmatpush1.msra.mxu0 0.0
    %50 = vmatprep.subr.mxu0 0.0
    %51 = vmatpush1.msra.mxu0 0.0
    %52 = vmatprep.subr.mxu0 0.0
    %53 = vmatpush1.msra.mxu0 0.0
    %54 = vmatprep.subr.mxu0 0.0
    %55 = vmatpush1.msra.mxu0 0.0
    %56 = vmatprep.subr.mxu0 0.0
    %57 = vmatpush1.msra.mxu0 0.0
    %58 = vmatprep.subr.mxu0 0.0
    %59 = vmatpush1.msra.mxu0 0.0
    %60 = vmatprep.subr.mxu0 0.0
    %61 = vmatpush1.msra.mxu0 0.0
    %62 = vmatprep.subr.mxu0 0.0
    %63 = vmatpush1.msra.mxu0 0.0
    %64 = vmatprep.subr.mxu0 0.0
    %65 = vmatpush1.msra.mxu0 %v26
    %66 = vmatprep.subr.mxu0 0.0
    %67 = vmatpush1.msra.mxu0 %v25
    %68 = vmatprep.subr.mxu0 0.0
    %69 = vmatpush2.msra.mxu0 0.0
    %70 = vmatprep.subr.mxu0 0.0
    %71 = vmatpush2.msra.mxu0 0.0
    %72 = vmatprep.subr.mxu0 0.0
    %73 = vmatpush2.msra.mxu0 0.0
    %74 = vmatprep.subr.mxu0 0.0
    %75 = vmatpush2.msra.mxu0 0.0
    %76 = vmatprep.subr.mxu0 0.0
    %77 = vmatpush2.msra.mxu0 0.0
    %78 = vmatprep.subr.mxu0 0.0
    %79 = vmatpush2.msra.mxu0 0.0
    %80 = vmatprep.subr.mxu0 0.0
    %81 = vmatpush2.msra.mxu0 0.0
    %82 = vmatprep.subr.mxu0 0.0
    %83 = vmatpush2.msra.mxu0 0.0
    %84 = vmatprep.subr.mxu0 0.0
    %85 = vmatpush2.msra.mxu0 0.0
    %86 = vmatprep.subr.mxu0 0.0
    %87 = vmatpush2.msra.mxu0 0.0
    %88 = vmatprep.subr.mxu0 0.0
    %89 = vmatpush2.msra.mxu0 0.0
    %90 = vmatprep.subr.mxu0 0.0
    %91 = vmatpush2.msra.mxu0 0.0
    %92 = vmatprep.subr.mxu0 0.0
    %93 = vmatpush2.msra.mxu0 0.0
    %94 = vmatprep.subr.mxu0 0.0
    %95 = vmatpush2.msra.mxu0 0.0
    %96 = vmatprep.subr.mxu0 0.0
    %97 = vmatpush2.msra.mxu0 0.0
    %98 = vmatprep.subr.mxu0 0.0
    %99 = vmatpush2.msra.mxu0 0.0
    %100 = vmatprep.mubr.f32.mxu0 0.0
    %101 = vmatmul.mubr.f32.gmra.mxu0 %v34
    %v102 = vpop.f32.mrf.mxu0
    %v103 = vadd.f32 %v31, %v102
    %v104 = vpop.f32.mrf.mxu0
    %105 = vdwg.mxu0
    %v106 = vld [vmem:[%s5 + $0x60] sm:$0xff]
    %v107 = vld [vmem:[%s5 + $0x68] sm:$0x1]
    %v108 = vlaneseq
    %v109 = vshrl.u32 %v108, 7
    %v110 = vsub.s32 0, %v109
    %v111 = vrot.slane %v107, %v110
    %vm112 = vcmask 64512
    %v114 = vsel %vm112, %v103, 0
    %116 = vmatprep.subr.mxu0 0.0
    %117 = vmatpush1.msra.mxu0 0.0
    %118 = vmatprep.subr.mxu0 0.0
    %119 = vmatpush1.msra.mxu0 0.0
    %120 = vmatprep.subr.mxu0 0.0
    %121 = vmatpush1.msra.mxu0 0.0
    %122 = vmatprep.subr.mxu0 0.0
    %123 = vmatpush1.msra.mxu0 0.0
    %124 = vmatprep.subr.mxu0 0.0
    %125 = vmatpush1.msra.mxu0 0.0
    %126 = vmatprep.subr.mxu0 0.0
    %127 = vmatpush1.msra.mxu0 0.0
    %128 = vmatprep.subr.mxu0 0.0
    %129 = vmatpush1.msra.mxu0 0.0
    %130 = vmatprep.subr.mxu0 0.0
    %131 = vmatpush1.msra.mxu0 0.0
    %132 = vmatprep.subr.mxu0 0.0
    %133 = vmatpush1.msra.mxu0 0.0
    %134 = vmatprep.subr.mxu0 0.0
    %135 = vmatpush1.msra.mxu0 0.0
    %136 = vmatprep.subr.mxu0 0.0
    %137 = vmatpush1.msra.mxu0 0.0
    %138 = vmatprep.subr.mxu0 0.0
    %139 = vmatpush1.msra.mxu0 0.0
    %140 = vmatprep.subr.mxu0 0.0
    %141 = vmatpush1.msra.mxu0 0.0
    %142 = vmatprep.subr.mxu0 0.0
    %143 = vmatpush1.msra.mxu0 0.0
    %144 = vmatprep.subr.mxu0 0.0
    %145 = vmatpush1.msra.mxu0 0.0
    %146 = vmatprep.subr.mxu0 0.0
    %147 = vmatpush1.msra.mxu0 %v106
    %148 = vmatprep.subr.mxu0 0.0
    %149 = vmatpush2.msra.mxu0 0.0
    %150 = vmatprep.subr.mxu0 0.0
    %151 = vmatpush2.msra.mxu0 0.0
    %152 = vmatprep.subr.mxu0 0.0
    %153 = vmatpush2.msra.mxu0 0.0
    %154 = vmatprep.subr.mxu0 0.0
    %155 = vmatpush2.msra.mxu0 0.0
    %156 = vmatprep.subr.mxu0 0.0
    %157 = vmatpush2.msra.mxu0 0.0
    %158 = vmatprep.subr.mxu0 0.0
    %159 = vmatpush2.msra.mxu0 0.0
    %160 = vmatprep.subr.mxu0 0.0
    %161 = vmatpush2.msra.mxu0 0.0
    %162 = vmatprep.subr.mxu0 0.0
    %163 = vmatpush2.msra.mxu0 0.0
    %164 = vmatprep.subr.mxu0 0.0
    %165 = vmatpush2.msra.mxu0 0.0
    %166 = vmatprep.subr.mxu0 0.0
    %167 = vmatpush2.msra.mxu0 0.0
    %168 = vmatprep.subr.mxu0 0.0
    %169 = vmatpush2.msra.mxu0 0.0
    %170 = vmatprep.subr.mxu0 0.0
    %171 = vmatpush2.msra.mxu0 0.0
    %172 = vmatprep.subr.mxu0 0.0
    %173 = vmatpush2.msra.mxu0 0.0
    %174 = vmatprep.subr.mxu0 0.0
    %175 = vmatpush2.msra.mxu0 0.0
    %176 = vmatprep.subr.mxu0 0.0
    %177 = vmatpush2.msra.mxu0 0.0
    %178 = vmatprep.subr.mxu0 0.0
    %179 = vmatpush2.msra.mxu0 0.0
    %180 = vmatprep.mubr.f32.mxu0 0.0
    %181 = vmatmul.mubr.f32.gmra.mxu0 %v114
    %v182 = vpop.f32.mrf.mxu0
    %v183 = vadd.f32 %v111, %v182
    %v184 = vpop.f32.mrf.mxu0
    %185 = vdwg.mxu0
    %v186 = vld [vmem:[%s3] sm:$0x7]
    %v187 = vld [vmem:[%s0] sm:$0xff]
    %v188 = vld [vmem:[%s0 + $0x8] sm:$0xff]
    %vm191 = vcmask 1046528
    %v192 = vrot.slane %v187, 1
    %v193 = vrot.slane %v188, 1
    %v194 = vsel %vm191, %v192, %v193
    %195 = vrot.lane.b32.xlu0 %v194, 8
    %v196 = vpop.permute.xlu0 %195
    %197 = vrot.lane.b32.xlu0 %v193, 8
    %v198 = vpop.permute.xlu0 %197
    %vm201 = vcmask 1045504
    %v202 = vrot.slane %v187, 2
    %v203 = vrot.slane %v188, 2
    %v204 = vsel %vm201, %v202, %v203
    %205 = vrot.lane.b32.xlu0 %v204, 16
    %v206 = vpop.permute.xlu0 %205
    %207 = vrot.lane.b32.xlu0 %v203, 16
    %v208 = vpop.permute.xlu0 %207
    %v211 = vsel %vm112, %v187, %v196
    %v212 = vsel %vm112, %v188, %v198
    %v213 = vsel %vm32, %v211, %v206
    %v214 = vsel %vm32, %v212, %v208
    %s215 = scalar_lea.vmem %s0, 16
    %v216 = vld [vmem:[%s215] sm:$0xff]
    %v217 = vld [vmem:[%s215 + $0x8] sm:$0xff]
    %v220 = vrot.slane %v216, 1
    %v221 = vrot.slane %v217, 1
    %v222 = vsel %vm191, %v220, %v221
    %223 = vrot.lane.b32.xlu0 %v222, 8
    %v224 = vpop.permute.xlu0 %223
    %225 = vrot.lane.b32.xlu0 %v221, 8
    %v226 = vpop.permute.xlu0 %225
    %v229 = vrot.slane %v216, 2
    %v230 = vrot.slane %v217, 2
    %v231 = vsel %vm201, %v229, %v230
    %232 = vrot.lane.b32.xlu0 %v231, 16
    %v233 = vpop.permute.xlu0 %232
    %234 = vrot.lane.b32.xlu0 %v230, 16
    %v235 = vpop.permute.xlu0 %234
    %v238 = vsel %vm112, %v216, %v224
    %v239 = vsel %vm112, %v217, %v226
    %v240 = vsel %vm32, %v238, %v233
    %v241 = vsel %vm32, %v239, %v235
    %v244 = vrot.slane %v240, 2
    %v245 = vrot.slane %v241, 2
    %v246 = vsel %vm201, %v244, %v245
    %v248 = vsel %vm201, %v214, %v244
    %v249 = vld [vmem:[%s2] sm:$0xff]
    %v250 = vld [vmem:[%s2 + $0x8] sm:$0xff]
    %v251 = vld [vmem:[%s2 + $0x10] sm:$0xff]
    %v252 = vlaneseq
    %v253 = vshrl.u32 %v252, 7
    %v254 = vsub.s32 0, %v253
    %v255 = vrot.slane %v186, %v254
    %vm256 = vcmask 195584
    %v258 = vsel %vm256, %v213, 0
    %v261 = vsel %vm256, %v248, 0
    %v263 = vsel %vm256, %v246, 0
    %v265 = vsel %vm256, %v245, 0
    %267 = vmatprep.subr.mxu0 0.0
    %268 = vmatpush1.msra.mxu0 0.0
    %269 = vmatprep.subr.mxu0 0.0
    %270 = vmatpush1.msra.mxu0 0.0
    %271 = vmatprep.subr.mxu0 0.0
    %272 = vmatpush1.msra.mxu0 0.0
    %273 = vmatprep.subr.mxu0 0.0
    %274 = vmatpush1.msra.mxu0 0.0
    %275 = vmatprep.subr.mxu0 0.0
    %276 = vmatpush1.msra.mxu0 0.0
    %277 = vmatprep.subr.mxu0 0.0
    %278 = vmatpush1.msra.mxu0 0.0
    %279 = vmatprep.subr.mxu0 0.0
    %280 = vmatpush1.msra.mxu0 0.0
    %281 = vmatprep.subr.mxu0 0.0
    %282 = vmatpush1.msra.mxu0 0.0
    %283 = vmatprep.subr.mxu0 0.0
    %284 = vmatpush1.msra.mxu0 0.0
    %285 = vmatprep.subr.mxu0 0.0
    %286 = vmatpush1.msra.mxu0 0.0
    %287 = vmatprep.subr.mxu0 0.0
    %288 = vmatpush1.msra.mxu0 0.0
    %289 = vmatprep.subr.mxu0 0.0
    %290 = vmatpush1.msra.mxu0 0.0
    %291 = vmatprep.subr.mxu0 0.0
    %292 = vmatpush1.msra.mxu0 0.0
    %293 = vmatprep.subr.mxu0 0.0
    %294 = vmatpush1.msra.mxu0 %v251
    %295 = vmatprep.subr.mxu0 0.0
    %296 = vmatpush1.msra.mxu0 %v250
    %297 = vmatprep.subr.mxu0 0.0
    %298 = vmatpush1.msra.mxu0 %v249
    %299 = vmatprep.subr.mxu0 0.0
    %300 = vmatpush2.msra.mxu0 0.0
    %301 = vmatprep.subr.mxu0 0.0
    %302 = vmatpush2.msra.mxu0 0.0
    %303 = vmatprep.subr.mxu0 0.0
    %304 = vmatpush2.msra.mxu0 0.0
    %305 = vmatprep.subr.mxu0 0.0
    %306 = vmatpush2.msra.mxu0 0.0
    %307 = vmatprep.subr.mxu0 0.0
    %308 = vmatpush2.msra.mxu0 0.0
    %309 = vmatprep.subr.mxu0 0.0
    %310 = vmatpush2.msra.mxu0 0.0
    %311 = vmatprep.subr.mxu0 0.0
    %312 = vmatpush2.msra.mxu0 0.0
    %313 = vmatprep.subr.mxu0 0.0
    %314 = vmatpush2.msra.mxu0 0.0
    %315 = vmatprep.subr.mxu0 0.0
    %316 = vmatpush2.msra.mxu0 0.0
    %317 = vmatprep.subr.mxu0 0.0
    %318 = vmatpush2.msra.mxu0 0.0
    %319 = vmatprep.subr.mxu0 0.0
    %320 = vmatpush2.msra.mxu0 0.0
    %321 = vmatprep.subr.mxu0 0.0
    %322 = vmatpush2.msra.mxu0 0.0
    %323 = vmatprep.subr.mxu0 0.0
    %324 = vmatpush2.msra.mxu0 0.0
    %325 = vmatprep.subr.mxu0 0.0
    %326 = vmatpush2.msra.mxu0 0.0
    %327 = vmatprep.subr.mxu0 0.0
    %328 = vmatpush2.msra.mxu0 0.0
    %329 = vmatprep.subr.mxu0 0.0
    %330 = vmatpush2.msra.mxu0 0.0
    %331 = vmatprep.mubr.f32.mxu0 0.0
    %332 = vmatmul.mubr.f32.gmra.mxu0 %v258
    %v333 = vpop.f32.mrf.mxu0
    %v334 = vadd.f32 %v255, %v333
    %v335 = vpop.f32.mrf.mxu0
    %336 = vmatprep.mubr.f32.mxu0 0.0
    %337 = vmatmul.mubr.f32.gmra.mxu0 %v261
    %v338 = vpop.f32.mrf.mxu0
    %v339 = vadd.f32 %v255, %v338
    %v340 = vpop.f32.mrf.mxu0
    %341 = vmatprep.mubr.f32.mxu0 0.0
    %342 = vmatmul.mubr.f32.gmra.mxu0 %v263
    %v343 = vpop.f32.mrf.mxu0
    %v344 = vadd.f32 %v255, %v343
    %v345 = vpop.f32.mrf.mxu0
    %346 = vmatprep.mubr.f32.mxu0 0.0
    %347 = vmatmul.mubr.f32.gmra.mxu0 %v265
    %v348 = vpop.f32.mrf.mxu0
    %v349 = vadd.f32 %v255, %v348
    %v350 = vpop.f32.mrf.mxu0
    %351 = vdwg.mxu0
    %v352 = vmax.f32 %v334, 0.0
    %v353 = vmax.f32 %v339, 0.0
    %v354 = vmax.f32 %v344, 0.0
    %v355 = vmax.f32 %v349, 0.0
    %vm356 = vcmask 261120
    %v357 = vsel %vm356, %v352, -inf
    %vm358 = vcmask 259072
    %v359 = vsel %vm358, %v353, -inf
    %v360 = vmax.f32 %v357, %v359
    %v361 = vrot.slane %v360, 4
    %v362 = vmax.f32 %v360, %v361
    %v363 = vrot.slane %v362, 2
    %v364 = vmax.f32 %v362, %v363
    %v365 = vrot.slane %v364, 1
    %v366 = vmax.f32 %v364, %v365
    %vm367 = vcmask 261126
    %v368 = vsel %vm367, %v353, -inf
    %v369 = vsel %vm356, %v354, -inf
    %vm370 = vcmask 257024
    %v371 = vsel %vm370, %v355, -inf
    %v372 = vmax.f32 %v368, %v369
    %v373 = vmax.f32 %v372, %v371
    %v374 = vrot.slane %v373, 4
    %v375 = vmax.f32 %v373, %v374
    %v376 = vrot.slane %v375, 2
    %v377 = vmax.f32 %v375, %v376
    %v378 = vrot.slane %v377, 1
    %v379 = vmax.f32 %v377, %v378
    %vm380 = vcmask 1040384
    %v381 = vsel %vm380, %v366, %v379
    %v382 = vld [vmem:[%s5] sm:$0xff]
    %v383 = vld [vmem:[%s5 + $0x8] sm:$0xff]
    %v384 = vld [vmem:[%s5 + $0x10] sm:$0xff]
    %v385 = vld [vmem:[%s5 + $0x18] sm:$0xff]
    %v387 = vsel %vm356, %v381, 0
    %389 = vmatprep.subr.mxu0 0.0
    %390 = vmatpush1.msra.mxu0 0.0
    %391 = vmatprep.subr.mxu0 0.0
    %392 = vmatpush1.msra.mxu0 0.0
    %393 = vmatprep.subr.mxu0 0.0
    %394 = vmatpush1.msra.mxu0 0.0
    %395 = vmatprep.subr.mxu0 0.0
    %396 = vmatpush1.msra.mxu0 0.0
    %397 = vmatprep.subr.mxu0 0.0
    %398 = vmatpush1.msra.mxu0 0.0
    %399 = vmatprep.subr.mxu0 0.0
    %400 = vmatpush1.msra.mxu0 0.0
    %401 = vmatprep.subr.mxu0 0.0
    %402 = vmatpush1.msra.mxu0 0.0
    %403 = vmatprep.subr.mxu0 0.0
    %404 = vmatpush1.msra.mxu0 0.0
    %405 = vmatprep.subr.mxu0 0.0
    %406 = vmatpush1.msra.mxu0 0.0
    %407 = vmatprep.subr.mxu0 0.0
    %408 = vmatpush1.msra.mxu0 0.0
    %409 = vmatprep.subr.mxu0 0.0
    %410 = vmatpush1.msra.mxu0 0.0
    %411 = vmatprep.subr.mxu0 0.0
    %412 = vmatpush1.msra.mxu0 0.0
    %413 = vmatprep.subr.mxu0 0.0
    %414 = vmatpush1.msra.mxu0 %v385
    %415 = vmatprep.subr.mxu0 0.0
    %416 = vmatpush1.msra.mxu0 %v384
    %417 = vmatprep.subr.mxu0 0.0
    %418 = vmatpush1.msra.mxu0 %v383
    %419 = vmatprep.subr.mxu0 0.0
    %420 = vmatpush1.msra.mxu0 %v382
    %421 = vmatprep.subr.mxu0 0.0
    %422 = vmatpush2.msra.mxu0 0.0
    %423 = vmatprep.subr.mxu0 0.0
    %424 = vmatpush2.msra.mxu0 0.0
    %425 = vmatprep.subr.mxu0 0.0
    %426 = vmatpush2.msra.mxu0 0.0
    %427 = vmatprep.subr.mxu0 0.0
    %428 = vmatpush2.msra.mxu0 0.0
    %429 = vmatprep.subr.mxu0 0.0
    %430 = vmatpush2.msra.mxu0 0.0
    %431 = vmatprep.subr.mxu0 0.0
    %432 = vmatpush2.msra.mxu0 0.0
    %433 = vmatprep.subr.mxu0 0.0
    %434 = vmatpush2.msra.mxu0 0.0
    %435 = vmatprep.subr.mxu0 0.0
    %436 = vmatpush2.msra.mxu0 0.0
    %437 = vmatprep.subr.mxu0 0.0
    %438 = vmatpush2.msra.mxu0 0.0
    %439 = vmatprep.subr.mxu0 0.0
    %440 = vmatpush2.msra.mxu0 0.0
    %441 = vmatprep.subr.mxu0 0.0
    %442 = vmatpush2.msra.mxu0 0.0
    %443 = vmatprep.subr.mxu0 0.0
    %444 = vmatpush2.msra.mxu0 0.0
    %445 = vmatprep.subr.mxu0 0.0
    %446 = vmatpush2.msra.mxu0 0.0
    %447 = vmatprep.subr.mxu0 0.0
    %448 = vmatpush2.msra.mxu0 0.0
    %449 = vmatprep.subr.mxu0 0.0
    %450 = vmatpush2.msra.mxu0 0.0
    %451 = vmatprep.subr.mxu0 0.0
    %452 = vmatpush2.msra.mxu0 0.0
    %453 = vmatprep.mubr.f32.mxu0 0.0
    %454 = vmatmul.mubr.f32.gmra.mxu0 %v387
    %v455 = vpop.f32.mrf.mxu0
    %v456 = vadd.f32 0.0, %v455
    %v457 = vpop.f32.mrf.mxu0
    %458 = vdwg.mxu0
    %v459 = vadd.f32 %v183, %v456
    %vm460 = vcmask 1044480
    %v461 = vrot.slane %v187, 3
    %v462 = vrot.slane %v188, 3
    %v463 = vsel %vm460, %v461, %v462
    %464 = vrot.lane.b32.xlu0 %v463, 24
    %v465 = vpop.permute.xlu0 %464
    %466 = vrot.lane.b32.xlu0 %v462, 24
    %v467 = vpop.permute.xlu0 %466
    %v470 = vsel %vm256, %v213, %v465
    %v471 = vsel %vm256, %v214, %v467
    %v472 = vrot.slane %v216, 3
    %v473 = vrot.slane %v217, 3
    %v474 = vsel %vm460, %v472, %v473
    %475 = vrot.lane.b32.xlu0 %v474, 24
    %v476 = vpop.permute.xlu0 %475
    %477 = vrot.lane.b32.xlu0 %v473, 24
    %v478 = vpop.permute.xlu0 %477
    %v481 = vsel %vm256, %v240, %v476
    %v482 = vsel %vm256, %v241, %v478
    %v485 = vrot.slane %v481, 3
    %v486 = vrot.slane %v482, 3
    %v487 = vsel %vm460, %v485, %v486
    %v489 = vsel %vm460, %v471, %v485
    %v490 = vld [vmem:[%s2 + $0x18] sm:$0xff]
    %v491 = vld [vmem:[%s2 + $0x20] sm:$0xff]
    %v492 = vld [vmem:[%s2 + $0x28] sm:$0xff]
    %v493 = vld [vmem:[%s2 + $0x30] sm:$0xff]
    %v494 = vlaneseq
    %v495 = vshrl.u32 %v494, 7
    %v496 = vsub.s32 1, %v495
    %v497 = vrot.slane %v186, %v496
    %v499 = vsel %vm356, %v470, 0
    %v502 = vsel %vm356, %v489, 0
    %v504 = vsel %vm356, %v487, 0
    %v506 = vsel %vm356, %v486, 0
    %508 = vmatprep.subr.mxu0 0.0
    %509 = vmatpush1.msra.mxu0 0.0
    %510 = vmatprep.subr.mxu0 0.0
    %511 = vmatpush1.msra.mxu0 0.0
    %512 = vmatprep.subr.mxu0 0.0
    %513 = vmatpush1.msra.mxu0 0.0
    %514 = vmatprep.subr.mxu0 0.0
    %515 = vmatpush1.msra.mxu0 0.0
    %516 = vmatprep.subr.mxu0 0.0
    %517 = vmatpush1.msra.mxu0 0.0
    %518 = vmatprep.subr.mxu0 0.0
    %519 = vmatpush1.msra.mxu0 0.0
    %520 = vmatprep.subr.mxu0 0.0
    %521 = vmatpush1.msra.mxu0 0.0
    %522 = vmatprep.subr.mxu0 0.0
    %523 = vmatpush1.msra.mxu0 0.0
    %524 = vmatprep.subr.mxu0 0.0
    %525 = vmatpush1.msra.mxu0 0.0
    %526 = vmatprep.subr.mxu0 0.0
    %527 = vmatpush1.msra.mxu0 0.0
    %528 = vmatprep.subr.mxu0 0.0
    %529 = vmatpush1.msra.mxu0 0.0
    %530 = vmatprep.subr.mxu0 0.0
    %531 = vmatpush1.msra.mxu0 0.0
    %532 = vmatprep.subr.mxu0 0.0
    %533 = vmatpush1.msra.mxu0 %v493
    %534 = vmatprep.subr.mxu0 0.0
    %535 = vmatpush1.msra.mxu0 %v492
    %536 = vmatprep.subr.mxu0 0.0
    %537 = vmatpush1.msra.mxu0 %v491
    %538 = vmatprep.subr.mxu0 0.0
    %539 = vmatpush1.msra.mxu0 %v490
    %540 = vmatprep.subr.mxu0 0.0
    %541 = vmatpush2.msra.mxu0 0.0
    %542 = vmatprep.subr.mxu0 0.0
    %543 = vmatpush2.msra.mxu0 0.0
    %544 = vmatprep.subr.mxu0 0.0
    %545 = vmatpush2.msra.mxu0 0.0
    %546 = vmatprep.subr.mxu0 0.0
    %547 = vmatpush2.msra.mxu0 0.0
    %548 = vmatprep.subr.mxu0 0.0
    %549 = vmatpush2.msra.mxu0 0.0
    %550 = vmatprep.subr.mxu0 0.0
    %551 = vmatpush2.msra.mxu0 0.0
    %552 = vmatprep.subr.mxu0 0.0
    %553 = vmatpush2.msra.mxu0 0.0
    %554 = vmatprep.subr.mxu0 0.0
    %555 = vmatpush2.msra.mxu0 0.0
    %556 = vmatprep.subr.mxu0 0.0
    %557 = vmatpush2.msra.mxu0 0.0
    %558 = vmatprep.subr.mxu0 0.0
    %559 = vmatpush2.msra.mxu0 0.0
    %560 = vmatprep.subr.mxu0 0.0
    %561 = vmatpush2.msra.mxu0 0.0
    %562 = vmatprep.subr.mxu0 0.0
    %563 = vmatpush2.msra.mxu0 0.0
    %564 = vmatprep.subr.mxu0 0.0
    %565 = vmatpush2.msra.mxu0 0.0
    %566 = vmatprep.subr.mxu0 0.0
    %567 = vmatpush2.msra.mxu0 0.0
    %568 = vmatprep.subr.mxu0 0.0
    %569 = vmatpush2.msra.mxu0 0.0
    %570 = vmatprep.subr.mxu0 0.0
    %571 = vmatpush2.msra.mxu0 0.0
    %572 = vmatprep.mubr.f32.mxu0 0.0
    %573 = vmatmul.mubr.f32.gmra.mxu0 %v499
    %v574 = vpop.f32.mrf.mxu0
    %v575 = vadd.f32 %v497, %v574
    %v576 = vpop.f32.mrf.mxu0
    %577 = vmatprep.mubr.f32.mxu0 0.0
    %578 = vmatmul.mubr.f32.gmra.mxu0 %v502
    %v579 = vpop.f32.mrf.mxu0
    %v580 = vadd.f32 %v497, %v579
    %v581 = vpop.f32.mrf.mxu0
    %582 = vmatprep.mubr.f32.mxu0 0.0
    %583 = vmatmul.mubr.f32.gmra.mxu0 %v504
    %v584 = vpop.f32.mrf.mxu0
    %v585 = vadd.f32 %v497, %v584
    %v586 = vpop.f32.mrf.mxu0
    %587 = vmatprep.mubr.f32.mxu0 0.0
    %588 = vmatmul.mubr.f32.gmra.mxu0 %v506
    %v589 = vpop.f32.mrf.mxu0
    %v590 = vadd.f32 %v497, %v589
    %v591 = vpop.f32.mrf.mxu0
    %592 = vdwg.mxu0
    %v593 = vmax.f32 %v575, 0.0
    %v594 = vmax.f32 %v580, 0.0
    %v595 = vmax.f32 %v585, 0.0
    %v596 = vmax.f32 %v590, 0.0
    %v597 = vsel %vm356, %v593, -inf
    %vm598 = vcmask 258048
    %v599 = vsel %vm598, %v594, -inf
    %v600 = vmax.f32 %v597, %v599
    %v601 = vrot.slane %v600, 4
    %v602 = vmax.f32 %v600, %v601
    %v603 = vrot.slane %v602, 2
    %v604 = vmax.f32 %v602, %v603
    %v605 = vrot.slane %v604, 1
    %v606 = vmax.f32 %v604, %v605
    %vm607 = vcmask 261125
    %v608 = vsel %vm607, %v594, -inf
    %v609 = vsel %vm356, %v595, -inf
    %vm610 = vcmask 254976
    %v611 = vsel %vm610, %v596, -inf
    %v612 = vmax.f32 %v608, %v609
    %v613 = vmax.f32 %v612, %v611
    %v614 = vrot.slane %v613, 4
    %v615 = vmax.f32 %v613, %v614
    %v616 = vrot.slane %v615, 2
    %v617 = vmax.f32 %v615, %v616
    %v618 = vrot.slane %v617, 1
    %v619 = vmax.f32 %v617, %v618
    %v620 = vsel %vm380, %v606, %v619
    %v621 = vld [vmem:[%s5 + $0x20] sm:$0xff]
    %v622 = vld [vmem:[%s5 + $0x28] sm:$0xff]
    %v623 = vld [vmem:[%s5 + $0x30] sm:$0xff]
    %v624 = vld [vmem:[%s5 + $0x38] sm:$0xff]
    %v626 = vsel %vm356, %v620, 0
    %628 = vmatprep.subr.mxu0 0.0
    %629 = vmatpush1.msra.mxu0 0.0
    %630 = vmatprep.subr.mxu0 0.0
    %631 = vmatpush1.msra.mxu0 0.0
    %632 = vmatprep.subr.mxu0 0.0
    %633 = vmatpush1.msra.mxu0 0.0
    %634 = vmatprep.subr.mxu0 0.0
    %635 = vmatpush1.msra.mxu0 0.0
    %636 = vmatprep.subr.mxu0 0.0
    %637 = vmatpush1.msra.mxu0 0.0
    %638 = vmatprep.subr.mxu0 0.0
    %639 = vmatpush1.msra.mxu0 0.0
    %640 = vmatprep.subr.mxu0 0.0
    %641 = vmatpush1.msra.mxu0 0.0
    %642 = vmatprep.subr.mxu0 0.0
    %643 = vmatpush1.msra.mxu0 0.0
    %644 = vmatprep.subr.mxu0 0.0
    %645 = vmatpush1.msra.mxu0 0.0
    %646 = vmatprep.subr.mxu0 0.0
    %647 = vmatpush1.msra.mxu0 0.0
    %648 = vmatprep.subr.mxu0 0.0
    %649 = vmatpush1.msra.mxu0 0.0
    %650 = vmatprep.subr.mxu0 0.0
    %651 = vmatpush1.msra.mxu0 0.0
    %652 = vmatprep.subr.mxu0 0.0
    %653 = vmatpush1.msra.mxu0 %v624
    %654 = vmatprep.subr.mxu0 0.0
    %655 = vmatpush1.msra.mxu0 %v623
    %656 = vmatprep.subr.mxu0 0.0
    %657 = vmatpush1.msra.mxu0 %v622
    %658 = vmatprep.subr.mxu0 0.0
    %659 = vmatpush1.msra.mxu0 %v621
    %660 = vmatprep.subr.mxu0 0.0
    %661 = vmatpush2.msra.mxu0 0.0
    %662 = vmatprep.subr.mxu0 0.0
    %663 = vmatpush2.msra.mxu0 0.0
    %664 = vmatprep.subr.mxu0 0.0
    %665 = vmatpush2.msra.mxu0 0.0
    %666 = vmatprep.subr.mxu0 0.0
    %667 = vmatpush2.msra.mxu0 0.0
    %668 = vmatprep.subr.mxu0 0.0
    %669 = vmatpush2.msra.mxu0 0.0
    %670 = vmatprep.subr.mxu0 0.0
    %671 = vmatpush2.msra.mxu0 0.0
    %672 = vmatprep.subr.mxu0 0.0
    %673 = vmatpush2.msra.mxu0 0.0
    %674 = vmatprep.subr.mxu0 0.0
    %675 = vmatpush2.msra.mxu0 0.0
    %676 = vmatprep.subr.mxu0 0.0
    %677 = vmatpush2.msra.mxu0 0.0
    %678 = vmatprep.subr.mxu0 0.0
    %679 = vmatpush2.msra.mxu0 0.0
    %680 = vmatprep.subr.mxu0 0.0
    %681 = vmatpush2.msra.mxu0 0.0
    %682 = vmatprep.subr.mxu0 0.0
    %683 = vmatpush2.msra.mxu0 0.0
    %684 = vmatprep.subr.mxu0 0.0
    %685 = vmatpush2.msra.mxu0 0.0
    %686 = vmatprep.subr.mxu0 0.0
    %687 = vmatpush2.msra.mxu0 0.0
    %688 = vmatprep.subr.mxu0 0.0
    %689 = vmatpush2.msra.mxu0 0.0
    %690 = vmatprep.subr.mxu0 0.0
    %691 = vmatpush2.msra.mxu0 0.0
    %692 = vmatprep.mubr.f32.mxu0 0.0
    %693 = vmatmul.mubr.f32.gmra.mxu0 %v626
    %v694 = vpop.f32.mrf.mxu0
    %v695 = vadd.f32 0.0, %v694
    %v696 = vpop.f32.mrf.mxu0
    %697 = vdwg.mxu0
    %v698 = vadd.f32 %v459, %v695
    %vm699 = vcmask 1043456
    %v700 = vrot.slane %v187, 4
    %v701 = vrot.slane %v188, 4
    %v702 = vsel %vm699, %v700, %v701
    %703 = vrot.lane.b32.xlu0 %v702, 32
    %v704 = vpop.permute.xlu0 %703
    %705 = vrot.lane.b32.xlu0 %v701, 32
    %v706 = vpop.permute.xlu0 %705
    %v709 = vsel %vm356, %v470, %v704
    %v710 = vsel %vm356, %v471, %v706
    %v711 = vrot.slane %v216, 4
    %v712 = vrot.slane %v217, 4
    %v713 = vsel %vm699, %v711, %v712
    %714 = vrot.lane.b32.xlu0 %v713, 32
    %v715 = vpop.permute.xlu0 %714
    %716 = vrot.lane.b32.xlu0 %v712, 32
    %v717 = vpop.permute.xlu0 %716
    %v720 = vsel %vm356, %v481, %v715
    %v721 = vsel %vm356, %v482, %v717
    %v724 = vrot.slane %v720, 4
    %v725 = vrot.slane %v721, 4
    %v726 = vsel %vm699, %v724, %v725
    %v728 = vsel %vm699, %v710, %v724
    %v729 = vld [vmem:[%s2 + $0x38] sm:$0xff]
    %v730 = vld [vmem:[%s2 + $0x40] sm:$0xff]
    %v731 = vld [vmem:[%s2 + $0x48] sm:$0xff]
    %v732 = vld [vmem:[%s2 + $0x50] sm:$0xff]
    %v733 = vld [vmem:[%s2 + $0x58] sm:$0xff]
    %v734 = vlaneseq
    %v735 = vshrl.u32 %v734, 7
    %v736 = vsub.s32 2, %v735
    %v737 = vrot.slane %v186, %v736
    %vm738 = vcmask 326656
    %v740 = vsel %vm738, %v709, 0
    %v743 = vsel %vm738, %v728, 0
    %v745 = vsel %vm738, %v726, 0
    %747 = vmatprep.subr.mxu0 0.0
    %748 = vmatpush1.msra.mxu0 0.0
    %749 = vmatprep.subr.mxu0 0.0
    %750 = vmatpush1.msra.mxu0 0.0
    %751 = vmatprep.subr.mxu0 0.0
    %752 = vmatpush1.msra.mxu0 0.0
    %753 = vmatprep.subr.mxu0 0.0
    %754 = vmatpush1.msra.mxu0 0.0
    %755 = vmatprep.subr.mxu0 0.0
    %756 = vmatpush1.msra.mxu0 0.0
    %757 = vmatprep.subr.mxu0 0.0
    %758 = vmatpush1.msra.mxu0 0.0
    %759 = vmatprep.subr.mxu0 0.0
    %760 = vmatpush1.msra.mxu0 0.0
    %761 = vmatprep.subr.mxu0 0.0
    %762 = vmatpush1.msra.mxu0 0.0
    %763 = vmatprep.subr.mxu0 0.0
    %764 = vmatpush1.msra.mxu0 0.0
    %765 = vmatprep.subr.mxu0 0.0
    %766 = vmatpush1.msra.mxu0 0.0
    %767 = vmatprep.subr.mxu0 0.0
    %768 = vmatpush1.msra.mxu0 0.0
    %769 = vmatprep.subr.mxu0 0.0
    %770 = vmatpush1.msra.mxu0 %v733
    %771 = vmatprep.subr.mxu0 0.0
    %772 = vmatpush1.msra.mxu0 %v732
    %773 = vmatprep.subr.mxu0 0.0
    %774 = vmatpush1.msra.mxu0 %v731
    %775 = vmatprep.subr.mxu0 0.0
    %776 = vmatpush1.msra.mxu0 %v730
    %777 = vmatprep.subr.mxu0 0.0
    %778 = vmatpush1.msra.mxu0 %v729
    %779 = vmatprep.subr.mxu0 0.0
    %780 = vmatpush2.msra.mxu0 0.0
    %781 = vmatprep.subr.mxu0 0.0
    %782 = vmatpush2.msra.mxu0 0.0
    %783 = vmatprep.subr.mxu0 0.0
    %784 = vmatpush2.msra.mxu0 0.0
    %785 = vmatprep.subr.mxu0 0.0
    %786 = vmatpush2.msra.mxu0 0.0
    %787 = vmatprep.subr.mxu0 0.0
    %788 = vmatpush2.msra.mxu0 0.0
    %789 = vmatprep.subr.mxu0 0.0
    %790 = vmatpush2.msra.mxu0 0.0
    %791 = vmatprep.subr.mxu0 0.0
    %792 = vmatpush2.msra.mxu0 0.0
    %793 = vmatprep.subr.mxu0 0.0
    %794 = vmatpush2.msra.mxu0 0.0
    %795 = vmatprep.subr.mxu0 0.0
    %796 = vmatpush2.msra.mxu0 0.0
    %797 = vmatprep.subr.mxu0 0.0
    %798 = vmatpush2.msra.mxu0 0.0
    %799 = vmatprep.subr.mxu0 0.0
    %800 = vmatpush2.msra.mxu0 0.0
    %801 = vmatprep.subr.mxu0 0.0
    %802 = vmatpush2.msra.mxu0 0.0
    %803 = vmatprep.subr.mxu0 0.0
    %804 = vmatpush2.msra.mxu0 0.0
    %805 = vmatprep.subr.mxu0 0.0
    %806 = vmatpush2.msra.mxu0 0.0
    %807 = vmatprep.subr.mxu0 0.0
    %808 = vmatpush2.msra.mxu0 0.0
    %809 = vmatprep.subr.mxu0 0.0
    %810 = vmatpush2.msra.mxu0 0.0
    %811 = vmatprep.mubr.f32.mxu0 0.0
    %812 = vmatmul.mubr.f32.gmra.mxu0 %v740
    %v813 = vpop.f32.mrf.mxu0
    %v814 = vadd.f32 %v737, %v813
    %v815 = vpop.f32.mrf.mxu0
    %816 = vmatprep.mubr.f32.mxu0 0.0
    %817 = vmatmul.mubr.f32.gmra.mxu0 %v743
    %v818 = vpop.f32.mrf.mxu0
    %v819 = vadd.f32 %v737, %v818
    %v820 = vpop.f32.mrf.mxu0
    %821 = vmatprep.mubr.f32.mxu0 0.0
    %822 = vmatmul.mubr.f32.gmra.mxu0 %v745
    %v823 = vpop.f32.mrf.mxu0
    %v824 = vadd.f32 %v737, %v823
    %v825 = vpop.f32.mrf.mxu0
    %826 = vdwg.mxu0
    %v827 = vmax.f32 %v814, 0.0
    %v828 = vmax.f32 %v819, 0.0
    %v829 = vmax.f32 %v824, 0.0
    %v830 = vsel %vm356, %v827, -inf
    %v831 = vsel %vm370, %v828, -inf
    %v832 = vmax.f32 %v830, %v831
    %v833 = vrot.slane %v832, 4
    %v834 = vmax.f32 %v832, %v833
    %v835 = vrot.slane %v834, 2
    %v836 = vmax.f32 %v834, %v835
    %v837 = vrot.slane %v836, 1
    %v838 = vmax.f32 %v836, %v837
    %vm839 = vcmask 261124
    %v840 = vsel %vm839, %v828, -inf
    %v841 = vsel %vm356, %v829, -inf
    %v842 = vmax.f32 %v840, %v841
    %v843 = vrot.slane %v842, 4
    %v844 = vmax.f32 %v842, %v843
    %v845 = vrot.slane %v844, 2
    %v846 = vmax.f32 %v844, %v845
    %v847 = vrot.slane %v846, 1
    %v848 = vmax.f32 %v846, %v847
    %v849 = vsel %vm380, %v838, %v848
    %v850 = vld [vmem:[%s5 + $0x40] sm:$0xff]
    %v851 = vld [vmem:[%s5 + $0x48] sm:$0xff]
    %v852 = vld [vmem:[%s5 + $0x50] sm:$0xff]
    %v853 = vld [vmem:[%s5 + $0x58] sm:$0xff]
    %v855 = vsel %vm356, %v849, 0
    %857 = vmatprep.subr.mxu0 0.0
    %858 = vmatpush1.msra.mxu0 0.0
    %859 = vmatprep.subr.mxu0 0.0
    %860 = vmatpush1.msra.mxu0 0.0
    %861 = vmatprep.subr.mxu0 0.0
    %862 = vmatpush1.msra.mxu0 0.0
    %863 = vmatprep.subr.mxu0 0.0
    %864 = vmatpush1.msra.mxu0 0.0
    %865 = vmatprep.subr.mxu0 0.0
    %866 = vmatpush1.msra.mxu0 0.0
    %867 = vmatprep.subr.mxu0 0.0
    %868 = vmatpush1.msra.mxu0 0.0
    %869 = vmatprep.subr.mxu0 0.0
    %870 = vmatpush1.msra.mxu0 0.0
    %871 = vmatprep.subr.mxu0 0.0
    %872 = vmatpush1.msra.mxu0 0.0
    %873 = vmatprep.subr.mxu0 0.0
    %874 = vmatpush1.msra.mxu0 0.0
    %875 = vmatprep.subr.mxu0 0.0
    %876 = vmatpush1.msra.mxu0 0.0
    %877 = vmatprep.subr.mxu0 0.0
    %878 = vmatpush1.msra.mxu0 0.0
    %879 = vmatprep.subr.mxu0 0.0
    %880 = vmatpush1.msra.mxu0 0.0
    %881 = vmatprep.subr.mxu0 0.0
    %882 = vmatpush1.msra.mxu0 %v853
    %883 = vmatprep.subr.mxu0 0.0
    %884 = vmatpush1.msra.mxu0 %v852
    %885 = vmatprep.subr.mxu0 0.0
    %886 = vmatpush1.msra.mxu0 %v851
    %887 = vmatprep.subr.mxu0 0.0
    %888 = vmatpush1.msra.mxu0 %v850
    %889 = vmatprep.subr.mxu0 0.0
    %890 = vmatpush2.msra.mxu0 0.0
    %891 = vmatprep.subr.mxu0 0.0
    %892 = vmatpush2.msra.mxu0 0.0
    %893 = vmatprep.subr.mxu0 0.0
    %894 = vmatpush2.msra.mxu0 0.0
    %895 = vmatprep.subr.mxu0 0.0
    %896 = vmatpush2.msra.mxu0 0.0
    %897 = vmatprep.subr.mxu0 0.0
    %898 = vmatpush2.msra.mxu0 0.0
    %899 = vmatprep.subr.mxu0 0.0
    %900 = vmatpush2.msra.mxu0 0.0
    %901 = vmatprep.subr.mxu0 0.0
    %902 = vmatpush2.msra.mxu0 0.0
    %903 = vmatprep.subr.mxu0 0.0
    %904 = vmatpush2.msra.mxu0 0.0
    %905 = vmatprep.subr.mxu0 0.0
    %906 = vmatpush2.msra.mxu0 0.0
    %907 = vmatprep.subr.mxu0 0.0
    %908 = vmatpush2.msra.mxu0 0.0
    %909 = vmatprep.subr.mxu0 0.0
    %910 = vmatpush2.msra.mxu0 0.0
    %911 = vmatprep.subr.mxu0 0.0
    %912 = vmatpush2.msra.mxu0 0.0
    %913 = vmatprep.subr.mxu0 0.0
    %914 = vmatpush2.msra.mxu0 0.0
    %915 = vmatprep.subr.mxu0 0.0
    %916 = vmatpush2.msra.mxu0 0.0
    %917 = vmatprep.subr.mxu0 0.0
    %918 = vmatpush2.msra.mxu0 0.0
    %919 = vmatprep.subr.mxu0 0.0
    %920 = vmatpush2.msra.mxu0 0.0
    %921 = vmatprep.mubr.f32.mxu0 0.0
    %922 = vmatmul.mubr.f32.gmra.mxu0 %v855
    %v923 = vpop.f32.mrf.mxu0
    %v924 = vadd.f32 0.0, %v923
    %v925 = vpop.f32.mrf.mxu0
    %926 = vdwg.mxu0
    %v927 = vadd.f32 %v698, %v924
    %vm928 = vcmask 17408
    %929 = vst.msk [vmem:[#allocation2] sm:$0x3] %vm928, %v927
    // Predicated region
    $region26: #{tpu_custom_call.1} parent=1 // pred_check
      _
    $region27: #{tpu_custom_call.1} parent=1 // pred_check_branch
      %931 = sbr.rel (0) target = $region29
    $region28: #{tpu_custom_call.1} parent=1 // pred_region
      %s933 = ssub.s32 32, 32
      %934 = vsyncadd [#allocation3], %s933
      %s936 = sshll.u32 [#allocation2], 4
      %s937 = int_to_ptr.vmem [resolvable:$true] %s936
      %939 = dma.vmem_to_hbm [thread:$0]  %s937, 32, %s6, [#allocation3]
    $region29: #{tpu_custom_call.1} parent=1 // pred_fallthru
      _
    // Predicated region
    $region30: #{tpu_custom_call.1} parent=1 // pred_check
      _
    $region31: #{tpu_custom_call.1} parent=1 // pred_check_branch
      %941 = sbr.rel (0) target = $region33
    $region32: #{tpu_custom_call.1} parent=1 // pred_region
      %942 = dma.done [#allocation3], 32
    $region33: #{tpu_custom_call.1} parent=1 // pred_fallthru
      _
    %943 = vsyncpa [#allocation3], 1

</llo_original>
